<compile_context>
chip_gen: v7x
topology: tpu7x:2x2x1
jax: 0.10.0
libtpu: 0.0.40
codegen_flags: <defaults>
</compile_context>

<pallas_src>
import jax
import jax.numpy as jnp
import numpy as np
from jax.experimental import pallas as pl
from jax.experimental.pallas import tpu as pltpu  # noqa: F401  (TPU backend)

# ---- module hyperparameters (from the PyTorch script) ----
VOCAB_LEN = 8
EMB_DIM = 10
HID_DIM = 8
N_LAYERS = 1
DROPOUT_PROB = 0.5  # identity at inference


# --------------------- fused Encoder Pallas kernel ---------------------
def make_encoder_kernel(seq_len, batch, hid_dim):
    S, B, H = seq_len, batch, hid_dim

    def kernel(ids_ref, wcomb_ref, whh_ref, h_out_ref, c_out_ref):
        V = wcomb_ref.shape[0]

        # ---- fused gather + input projection + bias: one MXU pass ----
        # W_comb = emb @ W_ih^T + b was precomputed, so the one-hot matmul
        # directly yields the per-token input gate pre-activations.
        ids = ids_ref[...]                                        # (S*B, 1) i32
        vocab_iota = jax.lax.broadcasted_iota(jnp.int32, (S * B, V), 1)
        onehot = (ids == vocab_iota).astype(jnp.float32)          # (S*B, V)
        gx_all = jnp.dot(onehot, wcomb_ref[...],
                         preferred_element_type=jnp.float32)      # (S*B, 4H)
        # Dropout(p=0.5) on the embedding is identity at inference.

        # Per-step input-gate slices (static; independent of the recurrence,
        # so they can be scheduled off the serial critical path).
        gx_t = [gx_all[t * B:(t + 1) * B, :] for t in range(S)]   # each (B, 4H)

        # ---- hoisted constants (outside the time loop) ----
        # W_hh rows broadcast to (B, 4H) once (avoid per-iter broadcast_in_dim).
        w_hh = whh_ref[...]                                       # (H, 4H)
        w_rows = [jnp.broadcast_to(w_hh[k:k + 1, :], (B, 4 * H))
                  for k in range(H)]
        # sigmoid(x) = 0.5 + 0.5*tanh(0.5*x); g (cell candidate) lanes keep tanh.
        lane = jax.lax.broadcasted_iota(jnp.int32, (B, 4 * H), 1)
        is_g = (lane >= 2 * H) & (lane < 3 * H)
        scale = jnp.where(is_g, jnp.float32(1.0), jnp.float32(0.5))
        offset = jnp.where(is_g, jnp.float32(0.0), jnp.float32(0.5))

        h = jnp.zeros((B, H), jnp.float32)
        c = jnp.zeros((B, H), jnp.float32)

        # ---- serial recurrence, fully unrolled over S ----
        for t in range(S):
            gates = gx_t[t]
            # h @ W_hh as VPU broadcast-MACs (no tiny MXU round trips on the
            # dependent chain).
            for k in range(H):
                gates = gates + h[:, k:k + 1] * w_rows[k]         # (B, 4H)
            # Single tanh over the whole (B, 4H) vreg; per-lane affine recovers
            # the sigmoid gates.
            act = offset + scale * jnp.tanh(scale * gates)
            i_g = act[:, 0 * H:1 * H]
            f_g = act[:, 1 * H:2 * H]
            g_g = act[:, 2 * H:3 * H]
            o_g = act[:, 3 * H:4 * H]
            c = f_g * c + i_g * g_g
            h = o_g * jnp.tanh(c)

        # Final states directly in (1, B, H) layout (no post-kernel slicing).
        h_out_ref[...] = h[None, :, :]
        c_out_ref[...] = c[None, :, :]

    return kernel


def encoder_forward(input_batch, params):
    """input_batch: (S, B) int32 token ids -> (hidden, cell) each (1, B, H)."""
    emb_table, w_ih_t, w_hh_t, b = params
    S, B = input_batch.shape
    H = w_hh_t.shape[0]

    # Fold embedding + input projection + bias into one (V, 4H) matrix.
    w_comb = jnp.dot(emb_table, w_ih_t) + b                       # (V, 4H)

    ids_flat = input_batch.astype(jnp.int32).reshape(S * B, 1)
    kernel = make_encoder_kernel(S, B, H)

    # No grid: whole-array blocks, everything resident in VMEM (~2 KB).
    hidden, cell = pl.pallas_call(
        kernel,
        out_shape=(jax.ShapeDtypeStruct((1, B, H), jnp.float32),
                   jax.ShapeDtypeStruct((1, B, H), jnp.float32)),
    )(ids_flat, w_comb, w_hh_t)

    return hidden, cell


# --------------------- pure-JAX reference (for check) ---------------------
def lstm_encode_ref(x_emb, w_ih_t, w_hh_t, b):
    S, B, E = x_emb.shape
    H = w_hh_t.shape[0]

    def step(carry, x):
        h, c = carry
        gates = x @ w_ih_t + h @ w_hh_t + b
        i_g = jax.nn.sigmoid(gates[:, :H])
        f_g = jax.nn.sigmoid(gates[:, H:2 * H])
        g_g = jnp.tanh(gates[:, 2 * H:3 * H])
        o_g = jax.nn.sigmoid(gates[:, 3 * H:])
        c = f_g * c + i_g * g_g
        h = o_g * jnp.tanh(c)
        return (h, c), None

    init = (jnp.zeros((B, H), jnp.float32), jnp.zeros((B, H), jnp.float32))
    (h, c), _ = jax.lax.scan(step, init, x_emb)
    return h[None], c[None]


# ------------------------------ params ------------------------------
def init_params(key):
    k_emb, k_ih, k_hh, k_bih, k_bhh = jax.random.split(key, 5)
    # nn.Embedding: N(0, 1)
    emb_table = jax.random.normal(k_emb, (VOCAB_LEN, EMB_DIM), jnp.float32)
    # nn.LSTM: uniform(-1/sqrt(H), 1/sqrt(H))
    bound = 1.0 / np.sqrt(HID_DIM)
    w_ih = jax.random.uniform(k_ih, (4 * HID_DIM, EMB_DIM), jnp.float32,
                              -bound, bound)
    w_hh = jax.random.uniform(k_hh, (4 * HID_DIM, HID_DIM), jnp.float32,
                              -bound, bound)
    b_ih = jax.random.uniform(k_bih, (4 * HID_DIM,), jnp.float32, -bound, bound)
    b_hh = jax.random.uniform(k_bhh, (4 * HID_DIM,), jnp.float32, -bound, bound)
    # Pre-transpose weights so everything is plain x @ W^T matmuls.
    w_ih_t = w_ih.T                       # (E, 4H)
    w_hh_t = w_hh.T                       # (H, 4H)
    b = (b_ih + b_hh)[None, :]            # (1, 4H)
    return emb_table, w_ih_t, w_hh_t, b


if __name__ == "__main__":
    key = jax.random.PRNGKey(0)
    k_params, k_tok = jax.random.split(key)
    params = init_params(k_params)

    SEQ_LEN, BATCH = 8, 4
    input_batch = jax.random.randint(k_tok, (SEQ_LEN, BATCH), 0, VOCAB_LEN,
                                     dtype=jnp.int32)

    hidden, cell = encoder_forward(input_batch, params)
    hidden = jax.block_until_ready(hidden)
    cell = jax.block_until_ready(cell)

    # Cross-check against the pure-JAX reference (embedding gather + LSTM scan).
    embed = jnp.take(params[0], input_batch, axis=0)          # (S, B, E)
    h_ref, c_ref = lstm_encode_ref(embed, params[1], params[2], params[3])
    np.testing.assert_allclose(np.asarray(hidden), np.asarray(h_ref),
                               rtol=1e-5, atol=1e-5)
    np.testing.assert_allclose(np.asarray(cell), np.asarray(c_ref),
                               rtol=1e-5, atol=1e-5)

    assert hidden.shape == (N_LAYERS, BATCH, HID_DIM)
    assert cell.shape == (N_LAYERS, BATCH, HID_DIM)
    print("KERNEL_OK")
</pallas_src>

<mosaic_0001>
module attributes {stable_mosaic.version = 11 : i64} {
  func.func @kernel(%arg0: memref<32x1xi32, #tpu.memory_space<vmem>>, %arg1: memref<8x32xf32, #tpu.memory_space<vmem>>, %arg2: memref<8x32xf32, #tpu.memory_space<vmem>>, %arg3: memref<1x4x8xf32, #tpu.memory_space<vmem>>, %arg4: memref<1x4x8xf32, #tpu.memory_space<vmem>>) attributes {dimension_semantics = [], scalar_prefetch = 0 : i64, scratch_operands = 0 : i64, tpu.core_type = #tpu.core_type<tc>} {
    %c0 = arith.constant 0 : index
    %c0_0 = arith.constant 0 : index
    %0 = vector.load %arg0[%c0, %c0_0] : memref<32x1xi32, #tpu.memory_space<vmem>>, vector<32x1xi32>
    %1 = tpu.iota {dimensions = array<i32: 1>} : vector<32x8xi32>
    %2 = vector.broadcast %0 : vector<32x1xi32> to vector<32x8xi32>
    %3 = arith.cmpi eq, %2, %1 : vector<32x8xi32>
    %4 = arith.extui %3 : vector<32x8xi1> to vector<32x8xi32>
    %5 = arith.sitofp %4 : vector<32x8xi32> to vector<32x8xf32>
    %c0_1 = arith.constant 0 : index
    %c0_2 = arith.constant 0 : index
    %6 = vector.load %arg1[%c0_1, %c0_2] : memref<8x32xf32, #tpu.memory_space<vmem>>, vector<8x32xf32>
    %cst = arith.constant dense<0.000000e+00> : vector<32x32xf32>
    %7 = tpu.matmul %5, %6, %cst {dimension_numbers = #tpu.dot_dimension_numbers<[1], [0], [0], [1], [0, 0, 1, 1], [], []>} : vector<32x8xf32>, vector<8x32xf32>, vector<32x32xf32> -> vector<32x32xf32>
    %8 = vector.extract_strided_slice %7 {offsets = [0, 0], sizes = [4, 32], strides = [1, 1]} : vector<32x32xf32> to vector<4x32xf32>
    %9 = vector.extract_strided_slice %7 {offsets = [4, 0], sizes = [4, 32], strides = [1, 1]} : vector<32x32xf32> to vector<4x32xf32>
    %10 = vector.extract_strided_slice %7 {offsets = [8, 0], sizes = [4, 32], strides = [1, 1]} : vector<32x32xf32> to vector<4x32xf32>
    %11 = vector.extract_strided_slice %7 {offsets = [12, 0], sizes = [4, 32], strides = [1, 1]} : vector<32x32xf32> to vector<4x32xf32>
    %12 = vector.extract_strided_slice %7 {offsets = [16, 0], sizes = [4, 32], strides = [1, 1]} : vector<32x32xf32> to vector<4x32xf32>
    %13 = vector.extract_strided_slice %7 {offsets = [20, 0], sizes = [4, 32], strides = [1, 1]} : vector<32x32xf32> to vector<4x32xf32>
    %14 = vector.extract_strided_slice %7 {offsets = [24, 0], sizes = [4, 32], strides = [1, 1]} : vector<32x32xf32> to vector<4x32xf32>
    %15 = vector.extract_strided_slice %7 {offsets = [28, 0], sizes = [4, 32], strides = [1, 1]} : vector<32x32xf32> to vector<4x32xf32>
    %c0_3 = arith.constant 0 : index
    %c0_4 = arith.constant 0 : index
    %16 = vector.load %arg2[%c0_3, %c0_4] : memref<8x32xf32, #tpu.memory_space<vmem>>, vector<8x32xf32>
    %17 = vector.extract_strided_slice %16 {offsets = [0, 0], sizes = [1, 32], strides = [1, 1]} : vector<8x32xf32> to vector<1x32xf32>
    %18 = vector.shape_cast %17 : vector<1x32xf32> to vector<1x32xf32>
    %19 = vector.broadcast %18 : vector<1x32xf32> to vector<4x32xf32>
    %20 = vector.extract_strided_slice %16 {offsets = [1, 0], sizes = [1, 32], strides = [1, 1]} : vector<8x32xf32> to vector<1x32xf32>
    %21 = vector.shape_cast %20 : vector<1x32xf32> to vector<1x32xf32>
    %22 = vector.broadcast %21 : vector<1x32xf32> to vector<4x32xf32>
    %23 = vector.extract_strided_slice %16 {offsets = [2, 0], sizes = [1, 32], strides = [1, 1]} : vector<8x32xf32> to vector<1x32xf32>
    %24 = vector.shape_cast %23 : vector<1x32xf32> to vector<1x32xf32>
    %25 = vector.broadcast %24 : vector<1x32xf32> to vector<4x32xf32>
    %26 = vector.extract_strided_slice %16 {offsets = [3, 0], sizes = [1, 32], strides = [1, 1]} : vector<8x32xf32> to vector<1x32xf32>
    %27 = vector.shape_cast %26 : vector<1x32xf32> to vector<1x32xf32>
    %28 = vector.broadcast %27 : vector<1x32xf32> to vector<4x32xf32>
    %29 = vector.extract_strided_slice %16 {offsets = [4, 0], sizes = [1, 32], strides = [1, 1]} : vector<8x32xf32> to vector<1x32xf32>
    %30 = vector.shape_cast %29 : vector<1x32xf32> to vector<1x32xf32>
    %31 = vector.broadcast %30 : vector<1x32xf32> to vector<4x32xf32>
    %32 = vector.extract_strided_slice %16 {offsets = [5, 0], sizes = [1, 32], strides = [1, 1]} : vector<8x32xf32> to vector<1x32xf32>
    %33 = vector.shape_cast %32 : vector<1x32xf32> to vector<1x32xf32>
    %34 = vector.broadcast %33 : vector<1x32xf32> to vector<4x32xf32>
    %35 = vector.extract_strided_slice %16 {offsets = [6, 0], sizes = [1, 32], strides = [1, 1]} : vector<8x32xf32> to vector<1x32xf32>
    %36 = vector.shape_cast %35 : vector<1x32xf32> to vector<1x32xf32>
    %37 = vector.broadcast %36 : vector<1x32xf32> to vector<4x32xf32>
    %38 = vector.extract_strided_slice %16 {offsets = [7, 0], sizes = [1, 32], strides = [1, 1]} : vector<8x32xf32> to vector<1x32xf32>
    %39 = vector.shape_cast %38 : vector<1x32xf32> to vector<1x32xf32>
    %40 = vector.broadcast %39 : vector<1x32xf32> to vector<4x32xf32>
    %41 = tpu.iota {dimensions = array<i32: 1>} : vector<4x32xi32>
    %c16_i32 = arith.constant 16 : i32
    %42 = vector.broadcast %c16_i32 : i32 to vector<4x32xi32>
    %43 = arith.cmpi sge, %41, %42 : vector<4x32xi32>
    %c24_i32 = arith.constant 24 : i32
    %44 = vector.broadcast %c24_i32 : i32 to vector<4x32xi32>
    %45 = arith.cmpi slt, %41, %44 : vector<4x32xi32>
    %46 = arith.andi %43, %45 : vector<4x32xi1>
    %cst_5 = arith.constant 1.000000e+00 : f32
    %cst_6 = arith.constant 5.000000e-01 : f32
    %47 = vector.broadcast %cst_5 : f32 to vector<4x32xf32>
    %48 = vector.broadcast %cst_6 : f32 to vector<4x32xf32>
    %49 = arith.select %46, %47, %48 : vector<4x32xi1>, vector<4x32xf32>
    %cst_7 = arith.constant 0.000000e+00 : f32
    %cst_8 = arith.constant 5.000000e-01 : f32
    %50 = vector.broadcast %cst_7 : f32 to vector<4x32xf32>
    %51 = vector.broadcast %cst_8 : f32 to vector<4x32xf32>
    %52 = arith.select %46, %50, %51 : vector<4x32xi1>, vector<4x32xf32>
    %cst_9 = arith.constant 0.000000e+00 : f32
    %53 = vector.broadcast %cst_9 : f32 to vector<4x8xf32>
    %cst_10 = arith.constant 0.000000e+00 : f32
    %54 = vector.broadcast %cst_10 : f32 to vector<4x8xf32>
    %55 = vector.extract_strided_slice %53 {offsets = [0, 0], sizes = [4, 1], strides = [1, 1]} : vector<4x8xf32> to vector<4x1xf32>
    %56 = vector.broadcast %55 : vector<4x1xf32> to vector<4x32xf32>
    %57 = arith.mulf %56, %19 : vector<4x32xf32>
    %58 = arith.addf %8, %57 : vector<4x32xf32>
    %59 = vector.extract_strided_slice %53 {offsets = [0, 1], sizes = [4, 1], strides = [1, 1]} : vector<4x8xf32> to vector<4x1xf32>
    %60 = vector.broadcast %59 : vector<4x1xf32> to vector<4x32xf32>
    %61 = arith.mulf %60, %22 : vector<4x32xf32>
    %62 = arith.addf %58, %61 : vector<4x32xf32>
    %63 = vector.extract_strided_slice %53 {offsets = [0, 2], sizes = [4, 1], strides = [1, 1]} : vector<4x8xf32> to vector<4x1xf32>
    %64 = vector.broadcast %63 : vector<4x1xf32> to vector<4x32xf32>
    %65 = arith.mulf %64, %25 : vector<4x32xf32>
    %66 = arith.addf %62, %65 : vector<4x32xf32>
    %67 = vector.extract_strided_slice %53 {offsets = [0, 3], sizes = [4, 1], strides = [1, 1]} : vector<4x8xf32> to vector<4x1xf32>
    %68 = vector.broadcast %67 : vector<4x1xf32> to vector<4x32xf32>
    %69 = arith.mulf %68, %28 : vector<4x32xf32>
    %70 = arith.addf %66, %69 : vector<4x32xf32>
    %71 = vector.extract_strided_slice %53 {offsets = [0, 4], sizes = [4, 1], strides = [1, 1]} : vector<4x8xf32> to vector<4x1xf32>
    %72 = vector.broadcast %71 : vector<4x1xf32> to vector<4x32xf32>
    %73 = arith.mulf %72, %31 : vector<4x32xf32>
    %74 = arith.addf %70, %73 : vector<4x32xf32>
    %75 = vector.extract_strided_slice %53 {offsets = [0, 5], sizes = [4, 1], strides = [1, 1]} : vector<4x8xf32> to vector<4x1xf32>
    %76 = vector.broadcast %75 : vector<4x1xf32> to vector<4x32xf32>
    %77 = arith.mulf %76, %34 : vector<4x32xf32>
    %78 = arith.addf %74, %77 : vector<4x32xf32>
    %79 = vector.extract_strided_slice %53 {offsets = [0, 6], sizes = [4, 1], strides = [1, 1]} : vector<4x8xf32> to vector<4x1xf32>
    %80 = vector.broadcast %79 : vector<4x1xf32> to vector<4x32xf32>
    %81 = arith.mulf %80, %37 : vector<4x32xf32>
    %82 = arith.addf %78, %81 : vector<4x32xf32>
    %83 = vector.extract_strided_slice %53 {offsets = [0, 7], sizes = [4, 1], strides = [1, 1]} : vector<4x8xf32> to vector<4x1xf32>
    %84 = vector.broadcast %83 : vector<4x1xf32> to vector<4x32xf32>
    %85 = arith.mulf %84, %40 : vector<4x32xf32>
    %86 = arith.addf %82, %85 : vector<4x32xf32>
    %87 = arith.mulf %49, %86 : vector<4x32xf32>
    %88 = math.tanh %87 : vector<4x32xf32>
    %89 = arith.mulf %49, %88 : vector<4x32xf32>
    %90 = arith.addf %52, %89 : vector<4x32xf32>
    %91 = vector.extract_strided_slice %90 {offsets = [0, 0], sizes = [4, 8], strides = [1, 1]} : vector<4x32xf32> to vector<4x8xf32>
    %92 = vector.extract_strided_slice %90 {offsets = [0, 8], sizes = [4, 8], strides = [1, 1]} : vector<4x32xf32> to vector<4x8xf32>
    %93 = vector.extract_strided_slice %90 {offsets = [0, 16], sizes = [4, 8], strides = [1, 1]} : vector<4x32xf32> to vector<4x8xf32>
    %94 = vector.extract_strided_slice %90 {offsets = [0, 24], sizes = [4, 8], strides = [1, 1]} : vector<4x32xf32> to vector<4x8xf32>
    %95 = arith.mulf %92, %54 : vector<4x8xf32>
    %96 = arith.mulf %91, %93 : vector<4x8xf32>
    %97 = arith.addf %95, %96 : vector<4x8xf32>
    %98 = math.tanh %97 : vector<4x8xf32>
    %99 = arith.mulf %94, %98 : vector<4x8xf32>
    %100 = vector.extract_strided_slice %99 {offsets = [0, 0], sizes = [4, 1], strides = [1, 1]} : vector<4x8xf32> to vector<4x1xf32>
    %101 = vector.broadcast %100 : vector<4x1xf32> to vector<4x32xf32>
    %102 = arith.mulf %101, %19 : vector<4x32xf32>
    %103 = arith.addf %9, %102 : vector<4x32xf32>
    %104 = vector.extract_strided_slice %99 {offsets = [0, 1], sizes = [4, 1], strides = [1, 1]} : vector<4x8xf32> to vector<4x1xf32>
    %105 = vector.broadcast %104 : vector<4x1xf32> to vector<4x32xf32>
    %106 = arith.mulf %105, %22 : vector<4x32xf32>
    %107 = arith.addf %103, %106 : vector<4x32xf32>
    %108 = vector.extract_strided_slice %99 {offsets = [0, 2], sizes = [4, 1], strides = [1, 1]} : vector<4x8xf32> to vector<4x1xf32>
    %109 = vector.broadcast %108 : vector<4x1xf32> to vector<4x32xf32>
    %110 = arith.mulf %109, %25 : vector<4x32xf32>
    %111 = arith.addf %107, %110 : vector<4x32xf32>
    %112 = vector.extract_strided_slice %99 {offsets = [0, 3], sizes = [4, 1], strides = [1, 1]} : vector<4x8xf32> to vector<4x1xf32>
    %113 = vector.broadcast %112 : vector<4x1xf32> to vector<4x32xf32>
    %114 = arith.mulf %113, %28 : vector<4x32xf32>
    %115 = arith.addf %111, %114 : vector<4x32xf32>
    %116 = vector.extract_strided_slice %99 {offsets = [0, 4], sizes = [4, 1], strides = [1, 1]} : vector<4x8xf32> to vector<4x1xf32>
    %117 = vector.broadcast %116 : vector<4x1xf32> to vector<4x32xf32>
    %118 = arith.mulf %117, %31 : vector<4x32xf32>
    %119 = arith.addf %115, %118 : vector<4x32xf32>
    %120 = vector.extract_strided_slice %99 {offsets = [0, 5], sizes = [4, 1], strides = [1, 1]} : vector<4x8xf32> to vector<4x1xf32>
    %121 = vector.broadcast %120 : vector<4x1xf32> to vector<4x32xf32>
    %122 = arith.mulf %121, %34 : vector<4x32xf32>
    %123 = arith.addf %119, %122 : vector<4x32xf32>
    %124 = vector.extract_strided_slice %99 {offsets = [0, 6], sizes = [4, 1], strides = [1, 1]} : vector<4x8xf32> to vector<4x1xf32>
    %125 = vector.broadcast %124 : vector<4x1xf32> to vector<4x32xf32>
    %126 = arith.mulf %125, %37 : vector<4x32xf32>
    %127 = arith.addf %123, %126 : vector<4x32xf32>
    %128 = vector.extract_strided_slice %99 {offsets = [0, 7], sizes = [4, 1], strides = [1, 1]} : vector<4x8xf32> to vector<4x1xf32>
    %129 = vector.broadcast %128 : vector<4x1xf32> to vector<4x32xf32>
    %130 = arith.mulf %129, %40 : vector<4x32xf32>
    %131 = arith.addf %127, %130 : vector<4x32xf32>
    %132 = arith.mulf %49, %131 : vector<4x32xf32>
    %133 = math.tanh %132 : vector<4x32xf32>
    %134 = arith.mulf %49, %133 : vector<4x32xf32>
    %135 = arith.addf %52, %134 : vector<4x32xf32>
    %136 = vector.extract_strided_slice %135 {offsets = [0, 0], sizes = [4, 8], strides = [1, 1]} : vector<4x32xf32> to vector<4x8xf32>
    %137 = vector.extract_strided_slice %135 {offsets = [0, 8], sizes = [4, 8], strides = [1, 1]} : vector<4x32xf32> to vector<4x8xf32>
    %138 = vector.extract_strided_slice %135 {offsets = [0, 16], sizes = [4, 8], strides = [1, 1]} : vector<4x32xf32> to vector<4x8xf32>
    %139 = vector.extract_strided_slice %135 {offsets = [0, 24], sizes = [4, 8], strides = [1, 1]} : vector<4x32xf32> to vector<4x8xf32>
    %140 = arith.mulf %137, %97 : vector<4x8xf32>
    %141 = arith.mulf %136, %138 : vector<4x8xf32>
    %142 = arith.addf %140, %141 : vector<4x8xf32>
    %143 = math.tanh %142 : vector<4x8xf32>
    %144 = arith.mulf %139, %143 : vector<4x8xf32>
    %145 = vector.extract_strided_slice %144 {offsets = [0, 0], sizes = [4, 1], strides = [1, 1]} : vector<4x8xf32> to vector<4x1xf32>
    %146 = vector.broadcast %145 : vector<4x1xf32> to vector<4x32xf32>
    %147 = arith.mulf %146, %19 : vector<4x32xf32>
    %148 = arith.addf %10, %147 : vector<4x32xf32>
    %149 = vector.extract_strided_slice %144 {offsets = [0, 1], sizes = [4, 1], strides = [1, 1]} : vector<4x8xf32> to vector<4x1xf32>
    %150 = vector.broadcast %149 : vector<4x1xf32> to vector<4x32xf32>
    %151 = arith.mulf %150, %22 : vector<4x32xf32>
    %152 = arith.addf %148, %151 : vector<4x32xf32>
    %153 = vector.extract_strided_slice %144 {offsets = [0, 2], sizes = [4, 1], strides = [1, 1]} : vector<4x8xf32> to vector<4x1xf32>
    %154 = vector.broadcast %153 : vector<4x1xf32> to vector<4x32xf32>
    %155 = arith.mulf %154, %25 : vector<4x32xf32>
    %156 = arith.addf %152, %155 : vector<4x32xf32>
    %157 = vector.extract_strided_slice %144 {offsets = [0, 3], sizes = [4, 1], strides = [1, 1]} : vector<4x8xf32> to vector<4x1xf32>
    %158 = vector.broadcast %157 : vector<4x1xf32> to vector<4x32xf32>
    %159 = arith.mulf %158, %28 : vector<4x32xf32>
    %160 = arith.addf %156, %159 : vector<4x32xf32>
    %161 = vector.extract_strided_slice %144 {offsets = [0, 4], sizes = [4, 1], strides = [1, 1]} : vector<4x8xf32> to vector<4x1xf32>
    %162 = vector.broadcast %161 : vector<4x1xf32> to vector<4x32xf32>
    %163 = arith.mulf %162, %31 : vector<4x32xf32>
    %164 = arith.addf %160, %163 : vector<4x32xf32>
    %165 = vector.extract_strided_slice %144 {offsets = [0, 5], sizes = [4, 1], strides = [1, 1]} : vector<4x8xf32> to vector<4x1xf32>
    %166 = vector.broadcast %165 : vector<4x1xf32> to vector<4x32xf32>
    %167 = arith.mulf %166, %34 : vector<4x32xf32>
    %168 = arith.addf %164, %167 : vector<4x32xf32>
    %169 = vector.extract_strided_slice %144 {offsets = [0, 6], sizes = [4, 1], strides = [1, 1]} : vector<4x8xf32> to vector<4x1xf32>
    %170 = vector.broadcast %169 : vector<4x1xf32> to vector<4x32xf32>
    %171 = arith.mulf %170, %37 : vector<4x32xf32>
    %172 = arith.addf %168, %171 : vector<4x32xf32>
    %173 = vector.extract_strided_slice %144 {offsets = [0, 7], sizes = [4, 1], strides = [1, 1]} : vector<4x8xf32> to vector<4x1xf32>
    %174 = vector.broadcast %173 : vector<4x1xf32> to vector<4x32xf32>
    %175 = arith.mulf %174, %40 : vector<4x32xf32>
    %176 = arith.addf %172, %175 : vector<4x32xf32>
    %177 = arith.mulf %49, %176 : vector<4x32xf32>
    %178 = math.tanh %177 : vector<4x32xf32>
    %179 = arith.mulf %49, %178 : vector<4x32xf32>
    %180 = arith.addf %52, %179 : vector<4x32xf32>
    %181 = vector.extract_strided_slice %180 {offsets = [0, 0], sizes = [4, 8], strides = [1, 1]} : vector<4x32xf32> to vector<4x8xf32>
    %182 = vector.extract_strided_slice %180 {offsets = [0, 8], sizes = [4, 8], strides = [1, 1]} : vector<4x32xf32> to vector<4x8xf32>
    %183 = vector.extract_strided_slice %180 {offsets = [0, 16], sizes = [4, 8], strides = [1, 1]} : vector<4x32xf32> to vector<4x8xf32>
    %184 = vector.extract_strided_slice %180 {offsets = [0, 24], sizes = [4, 8], strides = [1, 1]} : vector<4x32xf32> to vector<4x8xf32>
    %185 = arith.mulf %182, %142 : vector<4x8xf32>
    %186 = arith.mulf %181, %183 : vector<4x8xf32>
    %187 = arith.addf %185, %186 : vector<4x8xf32>
    %188 = math.tanh %187 : vector<4x8xf32>
    %189 = arith.mulf %184, %188 : vector<4x8xf32>
    %190 = vector.extract_strided_slice %189 {offsets = [0, 0], sizes = [4, 1], strides = [1, 1]} : vector<4x8xf32> to vector<4x1xf32>
    %191 = vector.broadcast %190 : vector<4x1xf32> to vector<4x32xf32>
    %192 = arith.mulf %191, %19 : vector<4x32xf32>
    %193 = arith.addf %11, %192 : vector<4x32xf32>
    %194 = vector.extract_strided_slice %189 {offsets = [0, 1], sizes = [4, 1], strides = [1, 1]} : vector<4x8xf32> to vector<4x1xf32>
    %195 = vector.broadcast %194 : vector<4x1xf32> to vector<4x32xf32>
    %196 = arith.mulf %195, %22 : vector<4x32xf32>
    %197 = arith.addf %193, %196 : vector<4x32xf32>
    %198 = vector.extract_strided_slice %189 {offsets = [0, 2], sizes = [4, 1], strides = [1, 1]} : vector<4x8xf32> to vector<4x1xf32>
    %199 = vector.broadcast %198 : vector<4x1xf32> to vector<4x32xf32>
    %200 = arith.mulf %199, %25 : vector<4x32xf32>
    %201 = arith.addf %197, %200 : vector<4x32xf32>
    %202 = vector.extract_strided_slice %189 {offsets = [0, 3], sizes = [4, 1], strides = [1, 1]} : vector<4x8xf32> to vector<4x1xf32>
    %203 = vector.broadcast %202 : vector<4x1xf32> to vector<4x32xf32>
    %204 = arith.mulf %203, %28 : vector<4x32xf32>
    %205 = arith.addf %201, %204 : vector<4x32xf32>
    %206 = vector.extract_strided_slice %189 {offsets = [0, 4], sizes = [4, 1], strides = [1, 1]} : vector<4x8xf32> to vector<4x1xf32>
    %207 = vector.broadcast %206 : vector<4x1xf32> to vector<4x32xf32>
    %208 = arith.mulf %207, %31 : vector<4x32xf32>
    %209 = arith.addf %205, %208 : vector<4x32xf32>
    %210 = vector.extract_strided_slice %189 {offsets = [0, 5], sizes = [4, 1], strides = [1, 1]} : vector<4x8xf32> to vector<4x1xf32>
    %211 = vector.broadcast %210 : vector<4x1xf32> to vector<4x32xf32>
    %212 = arith.mulf %211, %34 : vector<4x32xf32>
    %213 = arith.addf %209, %212 : vector<4x32xf32>
    %214 = vector.extract_strided_slice %189 {offsets = [0, 6], sizes = [4, 1], strides = [1, 1]} : vector<4x8xf32> to vector<4x1xf32>
    %215 = vector.broadcast %214 : vector<4x1xf32> to vector<4x32xf32>
    %216 = arith.mulf %215, %37 : vector<4x32xf32>
    %217 = arith.addf %213, %216 : vector<4x32xf32>
    %218 = vector.extract_strided_slice %189 {offsets = [0, 7], sizes = [4, 1], strides = [1, 1]} : vector<4x8xf32> to vector<4x1xf32>
    %219 = vector.broadcast %218 : vector<4x1xf32> to vector<4x32xf32>
    %220 = arith.mulf %219, %40 : vector<4x32xf32>
    %221 = arith.addf %217, %220 : vector<4x32xf32>
    %222 = arith.mulf %49, %221 : vector<4x32xf32>
    %223 = math.tanh %222 : vector<4x32xf32>
    %224 = arith.mulf %49, %223 : vector<4x32xf32>
    %225 = arith.addf %52, %224 : vector<4x32xf32>
    %226 = vector.extract_strided_slice %225 {offsets = [0, 0], sizes = [4, 8], strides = [1, 1]} : vector<4x32xf32> to vector<4x8xf32>
    %227 = vector.extract_strided_slice %225 {offsets = [0, 8], sizes = [4, 8], strides = [1, 1]} : vector<4x32xf32> to vector<4x8xf32>
    %228 = vector.extract_strided_slice %225 {offsets = [0, 16], sizes = [4, 8], strides = [1, 1]} : vector<4x32xf32> to vector<4x8xf32>
    %229 = vector.extract_strided_slice %225 {offsets = [0, 24], sizes = [4, 8], strides = [1, 1]} : vector<4x32xf32> to vector<4x8xf32>
    %230 = arith.mulf %227, %187 : vector<4x8xf32>
    %231 = arith.mulf %226, %228 : vector<4x8xf32>
    %232 = arith.addf %230, %231 : vector<4x8xf32>
    %233 = math.tanh %232 : vector<4x8xf32>
    %234 = arith.mulf %229, %233 : vector<4x8xf32>
    %235 = vector.extract_strided_slice %234 {offsets = [0, 0], sizes = [4, 1], strides = [1, 1]} : vector<4x8xf32> to vector<4x1xf32>
    %236 = vector.broadcast %235 : vector<4x1xf32> to vector<4x32xf32>
    %237 = arith.mulf %236, %19 : vector<4x32xf32>
    %238 = arith.addf %12, %237 : vector<4x32xf32>
    %239 = vector.extract_strided_slice %234 {offsets = [0, 1], sizes = [4, 1], strides = [1, 1]} : vector<4x8xf32> to vector<4x1xf32>
    %240 = vector.broadcast %239 : vector<4x1xf32> to vector<4x32xf32>
    %241 = arith.mulf %240, %22 : vector<4x32xf32>
    %242 = arith.addf %238, %241 : vector<4x32xf32>
    %243 = vector.extract_strided_slice %234 {offsets = [0, 2], sizes = [4, 1], strides = [1, 1]} : vector<4x8xf32> to vector<4x1xf32>
    %244 = vector.broadcast %243 : vector<4x1xf32> to vector<4x32xf32>
    %245 = arith.mulf %244, %25 : vector<4x32xf32>
    %246 = arith.addf %242, %245 : vector<4x32xf32>
    %247 = vector.extract_strided_slice %234 {offsets = [0, 3], sizes = [4, 1], strides = [1, 1]} : vector<4x8xf32> to vector<4x1xf32>
    %248 = vector.broadcast %247 : vector<4x1xf32> to vector<4x32xf32>
    %249 = arith.mulf %248, %28 : vector<4x32xf32>
    %250 = arith.addf %246, %249 : vector<4x32xf32>
    %251 = vector.extract_strided_slice %234 {offsets = [0, 4], sizes = [4, 1], strides = [1, 1]} : vector<4x8xf32> to vector<4x1xf32>
    %252 = vector.broadcast %251 : vector<4x1xf32> to vector<4x32xf32>
    %253 = arith.mulf %252, %31 : vector<4x32xf32>
    %254 = arith.addf %250, %253 : vector<4x32xf32>
    %255 = vector.extract_strided_slice %234 {offsets = [0, 5], sizes = [4, 1], strides = [1, 1]} : vector<4x8xf32> to vector<4x1xf32>
    %256 = vector.broadcast %255 : vector<4x1xf32> to vector<4x32xf32>
    %257 = arith.mulf %256, %34 : vector<4x32xf32>
    %258 = arith.addf %254, %257 : vector<4x32xf32>
    %259 = vector.extract_strided_slice %234 {offsets = [0, 6], sizes = [4, 1], strides = [1, 1]} : vector<4x8xf32> to vector<4x1xf32>
    %260 = vector.broadcast %259 : vector<4x1xf32> to vector<4x32xf32>
    %261 = arith.mulf %260, %37 : vector<4x32xf32>
    %262 = arith.addf %258, %261 : vector<4x32xf32>
    %263 = vector.extract_strided_slice %234 {offsets = [0, 7], sizes = [4, 1], strides = [1, 1]} : vector<4x8xf32> to vector<4x1xf32>
    %264 = vector.broadcast %263 : vector<4x1xf32> to vector<4x32xf32>
    %265 = arith.mulf %264, %40 : vector<4x32xf32>
    %266 = arith.addf %262, %265 : vector<4x32xf32>
    %267 = arith.mulf %49, %266 : vector<4x32xf32>
    %268 = math.tanh %267 : vector<4x32xf32>
    %269 = arith.mulf %49, %268 : vector<4x32xf32>
    %270 = arith.addf %52, %269 : vector<4x32xf32>
    %271 = vector.extract_strided_slice %270 {offsets = [0, 0], sizes = [4, 8], strides = [1, 1]} : vector<4x32xf32> to vector<4x8xf32>
    %272 = vector.extract_strided_slice %270 {offsets = [0, 8], sizes = [4, 8], strides = [1, 1]} : vector<4x32xf32> to vector<4x8xf32>
    %273 = vector.extract_strided_slice %270 {offsets = [0, 16], sizes = [4, 8], strides = [1, 1]} : vector<4x32xf32> to vector<4x8xf32>
    %274 = vector.extract_strided_slice %270 {offsets = [0, 24], sizes = [4, 8], strides = [1, 1]} : vector<4x32xf32> to vector<4x8xf32>
    %275 = arith.mulf %272, %232 : vector<4x8xf32>
    %276 = arith.mulf %271, %273 : vector<4x8xf32>
    %277 = arith.addf %275, %276 : vector<4x8xf32>
    %278 = math.tanh %277 : vector<4x8xf32>
    %279 = arith.mulf %274, %278 : vector<4x8xf32>
    %280 = vector.extract_strided_slice %279 {offsets = [0, 0], sizes = [4, 1], strides = [1, 1]} : vector<4x8xf32> to vector<4x1xf32>
    %281 = vector.broadcast %280 : vector<4x1xf32> to vector<4x32xf32>
    %282 = arith.mulf %281, %19 : vector<4x32xf32>
    %283 = arith.addf %13, %282 : vector<4x32xf32>
    %284 = vector.extract_strided_slice %279 {offsets = [0, 1], sizes = [4, 1], strides = [1, 1]} : vector<4x8xf32> to vector<4x1xf32>
    %285 = vector.broadcast %284 : vector<4x1xf32> to vector<4x32xf32>
    %286 = arith.mulf %285, %22 : vector<4x32xf32>
    %287 = arith.addf %283, %286 : vector<4x32xf32>
    %288 = vector.extract_strided_slice %279 {offsets = [0, 2], sizes = [4, 1], strides = [1, 1]} : vector<4x8xf32> to vector<4x1xf32>
    %289 = vector.broadcast %288 : vector<4x1xf32> to vector<4x32xf32>
    %290 = arith.mulf %289, %25 : vector<4x32xf32>
    %291 = arith.addf %287, %290 : vector<4x32xf32>
    %292 = vector.extract_strided_slice %279 {offsets = [0, 3], sizes = [4, 1], strides = [1, 1]} : vector<4x8xf32> to vector<4x1xf32>
    %293 = vector.broadcast %292 : vector<4x1xf32> to vector<4x32xf32>
    %294 = arith.mulf %293, %28 : vector<4x32xf32>
    %295 = arith.addf %291, %294 : vector<4x32xf32>
    %296 = vector.extract_strided_slice %279 {offsets = [0, 4], sizes = [4, 1], strides = [1, 1]} : vector<4x8xf32> to vector<4x1xf32>
    %297 = vector.broadcast %296 : vector<4x1xf32> to vector<4x32xf32>
    %298 = arith.mulf %297, %31 : vector<4x32xf32>
    %299 = arith.addf %295, %298 : vector<4x32xf32>
    %300 = vector.extract_strided_slice %279 {offsets = [0, 5], sizes = [4, 1], strides = [1, 1]} : vector<4x8xf32> to vector<4x1xf32>
    %301 = vector.broadcast %300 : vector<4x1xf32> to vector<4x32xf32>
    %302 = arith.mulf %301, %34 : vector<4x32xf32>
    %303 = arith.addf %299, %302 : vector<4x32xf32>
    %304 = vector.extract_strided_slice %279 {offsets = [0, 6], sizes = [4, 1], strides = [1, 1]} : vector<4x8xf32> to vector<4x1xf32>
    %305 = vector.broadcast %304 : vector<4x1xf32> to vector<4x32xf32>
    %306 = arith.mulf %305, %37 : vector<4x32xf32>
    %307 = arith.addf %303, %306 : vector<4x32xf32>
    %308 = vector.extract_strided_slice %279 {offsets = [0, 7], sizes = [4, 1], strides = [1, 1]} : vector<4x8xf32> to vector<4x1xf32>
    %309 = vector.broadcast %308 : vector<4x1xf32> to vector<4x32xf32>
    %310 = arith.mulf %309, %40 : vector<4x32xf32>
    %311 = arith.addf %307, %310 : vector<4x32xf32>
    %312 = arith.mulf %49, %311 : vector<4x32xf32>
    %313 = math.tanh %312 : vector<4x32xf32>
    %314 = arith.mulf %49, %313 : vector<4x32xf32>
    %315 = arith.addf %52, %314 : vector<4x32xf32>
    %316 = vector.extract_strided_slice %315 {offsets = [0, 0], sizes = [4, 8], strides = [1, 1]} : vector<4x32xf32> to vector<4x8xf32>
    %317 = vector.extract_strided_slice %315 {offsets = [0, 8], sizes = [4, 8], strides = [1, 1]} : vector<4x32xf32> to vector<4x8xf32>
    %318 = vector.extract_strided_slice %315 {offsets = [0, 16], sizes = [4, 8], strides = [1, 1]} : vector<4x32xf32> to vector<4x8xf32>
    %319 = vector.extract_strided_slice %315 {offsets = [0, 24], sizes = [4, 8], strides = [1, 1]} : vector<4x32xf32> to vector<4x8xf32>
    %320 = arith.mulf %317, %277 : vector<4x8xf32>
    %321 = arith.mulf %316, %318 : vector<4x8xf32>
    %322 = arith.addf %320, %321 : vector<4x8xf32>
    %323 = math.tanh %322 : vector<4x8xf32>
    %324 = arith.mulf %319, %323 : vector<4x8xf32>
    %325 = vector.extract_strided_slice %324 {offsets = [0, 0], sizes = [4, 1], strides = [1, 1]} : vector<4x8xf32> to vector<4x1xf32>
    %326 = vector.broadcast %325 : vector<4x1xf32> to vector<4x32xf32>
    %327 = arith.mulf %326, %19 : vector<4x32xf32>
    %328 = arith.addf %14, %327 : vector<4x32xf32>
    %329 = vector.extract_strided_slice %324 {offsets = [0, 1], sizes = [4, 1], strides = [1, 1]} : vector<4x8xf32> to vector<4x1xf32>
    %330 = vector.broadcast %329 : vector<4x1xf32> to vector<4x32xf32>
    %331 = arith.mulf %330, %22 : vector<4x32xf32>
    %332 = arith.addf %328, %331 : vector<4x32xf32>
    %333 = vector.extract_strided_slice %324 {offsets = [0, 2], sizes = [4, 1], strides = [1, 1]} : vector<4x8xf32> to vector<4x1xf32>
    %334 = vector.broadcast %333 : vector<4x1xf32> to vector<4x32xf32>
    %335 = arith.mulf %334, %25 : vector<4x32xf32>
    %336 = arith.addf %332, %335 : vector<4x32xf32>
    %337 = vector.extract_strided_slice %324 {offsets = [0, 3], sizes = [4, 1], strides = [1, 1]} : vector<4x8xf32> to vector<4x1xf32>
    %338 = vector.broadcast %337 : vector<4x1xf32> to vector<4x32xf32>
    %339 = arith.mulf %338, %28 : vector<4x32xf32>
    %340 = arith.addf %336, %339 : vector<4x32xf32>
    %341 = vector.extract_strided_slice %324 {offsets = [0, 4], sizes = [4, 1], strides = [1, 1]} : vector<4x8xf32> to vector<4x1xf32>
    %342 = vector.broadcast %341 : vector<4x1xf32> to vector<4x32xf32>
    %343 = arith.mulf %342, %31 : vector<4x32xf32>
    %344 = arith.addf %340, %343 : vector<4x32xf32>
    %345 = vector.extract_strided_slice %324 {offsets = [0, 5], sizes = [4, 1], strides = [1, 1]} : vector<4x8xf32> to vector<4x1xf32>
    %346 = vector.broadcast %345 : vector<4x1xf32> to vector<4x32xf32>
    %347 = arith.mulf %346, %34 : vector<4x32xf32>
    %348 = arith.addf %344, %347 : vector<4x32xf32>
    %349 = vector.extract_strided_slice %324 {offsets = [0, 6], sizes = [4, 1], strides = [1, 1]} : vector<4x8xf32> to vector<4x1xf32>
    %350 = vector.broadcast %349 : vector<4x1xf32> to vector<4x32xf32>
    %351 = arith.mulf %350, %37 : vector<4x32xf32>
    %352 = arith.addf %348, %351 : vector<4x32xf32>
    %353 = vector.extract_strided_slice %324 {offsets = [0, 7], sizes = [4, 1], strides = [1, 1]} : vector<4x8xf32> to vector<4x1xf32>
    %354 = vector.broadcast %353 : vector<4x1xf32> to vector<4x32xf32>
    %355 = arith.mulf %354, %40 : vector<4x32xf32>
    %356 = arith.addf %352, %355 : vector<4x32xf32>
    %357 = arith.mulf %49, %356 : vector<4x32xf32>
    %358 = math.tanh %357 : vector<4x32xf32>
    %359 = arith.mulf %49, %358 : vector<4x32xf32>
    %360 = arith.addf %52, %359 : vector<4x32xf32>
    %361 = vector.extract_strided_slice %360 {offsets = [0, 0], sizes = [4, 8], strides = [1, 1]} : vector<4x32xf32> to vector<4x8xf32>
    %362 = vector.extract_strided_slice %360 {offsets = [0, 8], sizes = [4, 8], strides = [1, 1]} : vector<4x32xf32> to vector<4x8xf32>
    %363 = vector.extract_strided_slice %360 {offsets = [0, 16], sizes = [4, 8], strides = [1, 1]} : vector<4x32xf32> to vector<4x8xf32>
    %364 = vector.extract_strided_slice %360 {offsets = [0, 24], sizes = [4, 8], strides = [1, 1]} : vector<4x32xf32> to vector<4x8xf32>
    %365 = arith.mulf %362, %322 : vector<4x8xf32>
    %366 = arith.mulf %361, %363 : vector<4x8xf32>
    %367 = arith.addf %365, %366 : vector<4x8xf32>
    %368 = math.tanh %367 : vector<4x8xf32>
    %369 = arith.mulf %364, %368 : vector<4x8xf32>
    %370 = vector.extract_strided_slice %369 {offsets = [0, 0], sizes = [4, 1], strides = [1, 1]} : vector<4x8xf32> to vector<4x1xf32>
    %371 = vector.broadcast %370 : vector<4x1xf32> to vector<4x32xf32>
    %372 = arith.mulf %371, %19 : vector<4x32xf32>
    %373 = arith.addf %15, %372 : vector<4x32xf32>
    %374 = vector.extract_strided_slice %369 {offsets = [0, 1], sizes = [4, 1], strides = [1, 1]} : vector<4x8xf32> to vector<4x1xf32>
    %375 = vector.broadcast %374 : vector<4x1xf32> to vector<4x32xf32>
    %376 = arith.mulf %375, %22 : vector<4x32xf32>
    %377 = arith.addf %373, %376 : vector<4x32xf32>
    %378 = vector.extract_strided_slice %369 {offsets = [0, 2], sizes = [4, 1], strides = [1, 1]} : vector<4x8xf32> to vector<4x1xf32>
    %379 = vector.broadcast %378 : vector<4x1xf32> to vector<4x32xf32>
    %380 = arith.mulf %379, %25 : vector<4x32xf32>
    %381 = arith.addf %377, %380 : vector<4x32xf32>
    %382 = vector.extract_strided_slice %369 {offsets = [0, 3], sizes = [4, 1], strides = [1, 1]} : vector<4x8xf32> to vector<4x1xf32>
    %383 = vector.broadcast %382 : vector<4x1xf32> to vector<4x32xf32>
    %384 = arith.mulf %383, %28 : vector<4x32xf32>
    %385 = arith.addf %381, %384 : vector<4x32xf32>
    %386 = vector.extract_strided_slice %369 {offsets = [0, 4], sizes = [4, 1], strides = [1, 1]} : vector<4x8xf32> to vector<4x1xf32>
    %387 = vector.broadcast %386 : vector<4x1xf32> to vector<4x32xf32>
    %388 = arith.mulf %387, %31 : vector<4x32xf32>
    %389 = arith.addf %385, %388 : vector<4x32xf32>
    %390 = vector.extract_strided_slice %369 {offsets = [0, 5], sizes = [4, 1], strides = [1, 1]} : vector<4x8xf32> to vector<4x1xf32>
    %391 = vector.broadcast %390 : vector<4x1xf32> to vector<4x32xf32>
    %392 = arith.mulf %391, %34 : vector<4x32xf32>
    %393 = arith.addf %389, %392 : vector<4x32xf32>
    %394 = vector.extract_strided_slice %369 {offsets = [0, 6], sizes = [4, 1], strides = [1, 1]} : vector<4x8xf32> to vector<4x1xf32>
    %395 = vector.broadcast %394 : vector<4x1xf32> to vector<4x32xf32>
    %396 = arith.mulf %395, %37 : vector<4x32xf32>
    %397 = arith.addf %393, %396 : vector<4x32xf32>
    %398 = vector.extract_strided_slice %369 {offsets = [0, 7], sizes = [4, 1], strides = [1, 1]} : vector<4x8xf32> to vector<4x1xf32>
    %399 = vector.broadcast %398 : vector<4x1xf32> to vector<4x32xf32>
    %400 = arith.mulf %399, %40 : vector<4x32xf32>
    %401 = arith.addf %397, %400 : vector<4x32xf32>
    %402 = arith.mulf %49, %401 : vector<4x32xf32>
    %403 = math.tanh %402 : vector<4x32xf32>
    %404 = arith.mulf %49, %403 : vector<4x32xf32>
    %405 = arith.addf %52, %404 : vector<4x32xf32>
    %406 = vector.extract_strided_slice %405 {offsets = [0, 0], sizes = [4, 8], strides = [1, 1]} : vector<4x32xf32> to vector<4x8xf32>
    %407 = vector.extract_strided_slice %405 {offsets = [0, 8], sizes = [4, 8], strides = [1, 1]} : vector<4x32xf32> to vector<4x8xf32>
    %408 = vector.extract_strided_slice %405 {offsets = [0, 16], sizes = [4, 8], strides = [1, 1]} : vector<4x32xf32> to vector<4x8xf32>
    %409 = vector.extract_strided_slice %405 {offsets = [0, 24], sizes = [4, 8], strides = [1, 1]} : vector<4x32xf32> to vector<4x8xf32>
    %410 = arith.mulf %407, %367 : vector<4x8xf32>
    %411 = arith.mulf %406, %408 : vector<4x8xf32>
    %412 = arith.addf %410, %411 : vector<4x8xf32>
    %413 = math.tanh %412 : vector<4x8xf32>
    %414 = arith.mulf %409, %413 : vector<4x8xf32>
    %415 = vector.shape_cast %414 : vector<4x8xf32> to vector<1x4x8xf32>
    %c0_11 = arith.constant 0 : index
    %c0_12 = arith.constant 0 : index
    %c0_13 = arith.constant 0 : index
    %416 = vector.load %arg3[%c0_11, %c0_12, %c0_13] : memref<1x4x8xf32, #tpu.memory_space<vmem>>, vector<1x4x8xf32>
    tpu.vector_store %arg3[%c0_11, %c0_12, %c0_13], %415 {strides = array<i32>} : memref<1x4x8xf32, #tpu.memory_space<vmem>>, vector<1x4x8xf32>,
    %417 = vector.shape_cast %412 : vector<4x8xf32> to vector<1x4x8xf32>
    %c0_14 = arith.constant 0 : index
    %c0_15 = arith.constant 0 : index
    %c0_16 = arith.constant 0 : index
    %418 = vector.load %arg4[%c0_14, %c0_15, %c0_16] : memref<1x4x8xf32, #tpu.memory_space<vmem>>, vector<1x4x8xf32>
    tpu.vector_store %arg4[%c0_14, %c0_15, %c0_16], %417 {strides = array<i32>} : memref<1x4x8xf32, #tpu.memory_space<vmem>>, vector<1x4x8xf32>,
    return
  }
}

</mosaic_0001>

<llo_original>
// kernel: tpu_custom_call.1
$region0: #{tpu_custom_call.1}
  #allocation0 [shape = 'u32[]', space=smem, size = 0x4, offset = 0x4, fixed_abs, tag = 'smem constant byte address 0x4 - core index']
  #allocation1 [shape = 'u32[144,128]{1,0:T(1,128)}', space=vmem, size = 0x12000, scoped, tag = 'internal scratch']
  %s0 = inlined_call_operand.vmem [shape: s32[32,1], index: 0, kind: input, shape index: {}]
  %s1 = inlined_call_operand.vmem [shape: f32[8,32], index: 1, kind: input, shape index: {}]
  %s2 = inlined_call_operand.vmem [shape: f32[8,32], index: 2, kind: input, shape index: {}]
  %s3 = inlined_call_operand.hbm [shape: f32[1,4,8], index: 3, kind: output, shape index: {0}]
  %s4 = inlined_call_operand.hbm [shape: f32[1,4,8], index: 4, kind: output, shape index: {1}]
  %5 = xla_tuple %s3, %s4
  %s6 = sld [smem:[#allocation0]]
  $region30: #{tpu_custom_call.1} parent=0
    _
  %s8 = ssub.s32 1, %s6
  %s9 = scalar_select 0, %s8, %s6
  $region1: #{tpu_custom_call.1} parent=0
    #allocation2 [shape = 'u8[2048]{0}', space=vmem, size = 0x800, scoped, tag = 'output window, operand 0, single buffered']
    #allocation3 [shape = 's32[1]{0}', space=sflag, size = 0x4, scoped, tag = 'scoped memory for tpu_custom_call.1']
    #allocation4 [shape = 'u8[2048]{0}', space=vmem, size = 0x800, scoped, tag = 'output window, operand 1, single buffered']
    #allocation5 [shape = 's32[1]{0}', space=sflag, size = 0x4, scoped, tag = 'scoped memory for tpu_custom_call.1']
    %10 = vsyncpa [#allocation3], 0
    %11 = vsyncpa [#allocation5], 0
    // Predicated region
    $region2: #{tpu_custom_call.1} parent=1 // pred_check
      _
    $region3: #{tpu_custom_call.1} parent=1 // pred_check_branch
      %13 = sbr.rel (0) target = $region5
    $region4: #{tpu_custom_call.1} parent=1 // pred_region
      _
    $region5: #{tpu_custom_call.1} parent=1 // pred_fallthru
      _
    // Predicated region
    $region6: #{tpu_custom_call.1} parent=1 // pred_check
      _
    $region7: #{tpu_custom_call.1} parent=1 // pred_check_branch
      %15 = sbr.rel (0) target = $region9
    $region8: #{tpu_custom_call.1} parent=1 // pred_region
      _
    $region9: #{tpu_custom_call.1} parent=1 // pred_fallthru
      _
    // Predicated region
    $region10: #{tpu_custom_call.1} parent=1 // pred_check
      _
    $region11: #{tpu_custom_call.1} parent=1 // pred_check_branch
      %17 = sbr.rel (0) target = $region13
    $region12: #{tpu_custom_call.1} parent=1 // pred_region
      _
    $region13: #{tpu_custom_call.1} parent=1 // pred_fallthru
      _
    %v18 = vld [vmem:[%s0] sm:$0xff]
    %v19 = vld [vmem:[%s0 + $0x8] sm:$0xff]
    %v20 = vld [vmem:[%s0 + $0x10] sm:$0xff]
    %v21 = vld [vmem:[%s0 + $0x18] sm:$0xff]
    %v22 = vlaneseq
    %v23 = vand.u32 %v22, 127
    %24 = vset.pattern.permute.xlu0 0
    %25 = vperm.xlu0 %24, %v18
    %v26 = vpop.permute.xlu0 %25
    %27 = vset.pattern.permute.xlu0 0
    %28 = vperm.xlu0 %27, %v19
    %v29 = vpop.permute.xlu0 %28
    %30 = vset.pattern.permute.xlu0 0
    %31 = vperm.xlu0 %30, %v20
    %v32 = vpop.permute.xlu0 %31
    %33 = vset.pattern.permute.xlu0 0
    %34 = vperm.xlu0 %33, %v21
    %v35 = vpop.permute.xlu0 %34
    %vm36 = vcmp.eq.s32.totalorder %v26, %v23
    %vm37 = vcmp.eq.s32.totalorder %v29, %v23
    %vm38 = vcmp.eq.s32.totalorder %v32, %v23
    %vm39 = vcmp.eq.s32.totalorder %v35, %v23
    %v40 = vsel %vm36, 1, 0
    %v41 = vsel %vm37, 1, 0
    %v42 = vsel %vm38, 1, 0
    %v43 = vsel %vm39, 1, 0
    %v44 = vcvt.s32.f32 %v40
    %v45 = vcvt.s32.f32 %v41
    %v46 = vcvt.s32.f32 %v42
    %v47 = vcvt.s32.f32 %v43
    %v48 = vld [vmem:[%s1] sm:$0xff]
    %vm49 = vcmask 64512
    %v51 = vsel %vm49, %v44, 0
    %v54 = vsel %vm49, %v45, 0
    %v57 = vsel %vm49, %v46, 0
    %v60 = vsel %vm49, %v47, 0
    %62 = vmatprep.subr.mxu0 0.0
    %63 = vmatpush1.msra.mxu0 %v48
    %64 = vmatprep.subr.mxu0 0.0
    %65 = vmatpush1.msra.mxu0 0.0
    %66 = vmatprep.subr.mxu0 0.0
    %67 = vmatpush1.msra.mxu0 0.0
    %68 = vmatprep.subr.mxu0 0.0
    %69 = vmatpush1.msra.mxu0 0.0
    %70 = vmatprep.subr.mxu0 0.0
    %71 = vmatpush1.msra.mxu0 0.0
    %72 = vmatprep.subr.mxu0 0.0
    %73 = vmatpush1.msra.mxu0 0.0
    %74 = vmatprep.subr.mxu0 0.0
    %75 = vmatpush1.msra.mxu0 0.0
    %76 = vmatprep.subr.mxu0 0.0
    %77 = vmatpush1.msra.mxu0 0.0
    %78 = vmatprep.subr.mxu0 0.0
    %79 = vmatpush1.msra.mxu0 0.0
    %80 = vmatprep.subr.mxu0 0.0
    %81 = vmatpush1.msra.mxu0 0.0
    %82 = vmatprep.subr.mxu0 0.0
    %83 = vmatpush1.msra.mxu0 0.0
    %84 = vmatprep.subr.mxu0 0.0
    %85 = vmatpush1.msra.mxu0 0.0
    %86 = vmatprep.subr.mxu0 0.0
    %87 = vmatpush1.msra.mxu0 0.0
    %88 = vmatprep.subr.mxu0 0.0
    %89 = vmatpush1.msra.mxu0 0.0
    %90 = vmatprep.subr.mxu0 0.0
    %91 = vmatpush1.msra.mxu0 0.0
    %92 = vmatprep.subr.mxu0 0.0
    %93 = vmatpush1.msra.mxu0 0.0
    %94 = vmatprep.subr.mxu0 0.0
    %95 = vmatpush1.msra.mxu0 0.0
    %96 = vmatprep.subr.mxu0 0.0
    %97 = vmatpush1.msra.mxu0 0.0
    %98 = vmatprep.subr.mxu0 0.0
    %99 = vmatpush1.msra.mxu0 0.0
    %100 = vmatprep.subr.mxu0 0.0
    %101 = vmatpush1.msra.mxu0 0.0
    %102 = vmatprep.subr.mxu0 0.0
    %103 = vmatpush1.msra.mxu0 0.0
    %104 = vmatprep.subr.mxu0 0.0
    %105 = vmatpush1.msra.mxu0 0.0
    %106 = vmatprep.subr.mxu0 0.0
    %107 = vmatpush1.msra.mxu0 0.0
    %108 = vmatprep.subr.mxu0 0.0
    %109 = vmatpush1.msra.mxu0 0.0
    %110 = vmatprep.subr.mxu0 0.0
    %111 = vmatpush1.msra.mxu0 0.0
    %112 = vmatprep.subr.mxu0 0.0
    %113 = vmatpush1.msra.mxu0 0.0
    %114 = vmatprep.subr.mxu0 0.0
    %115 = vmatpush1.msra.mxu0 0.0
    %116 = vmatprep.subr.mxu0 0.0
    %117 = vmatpush1.msra.mxu0 0.0
    %118 = vmatprep.subr.mxu0 0.0
    %119 = vmatpush1.msra.mxu0 0.0
    %120 = vmatprep.subr.mxu0 0.0
    %121 = vmatpush1.msra.mxu0 0.0
    %122 = vmatprep.subr.mxu0 0.0
    %123 = vmatpush1.msra.mxu0 0.0
    %124 = vmatprep.subr.mxu0 0.0
    %125 = vmatpush1.msra.mxu0 0.0
    %126 = vmatprep.mubr.f32.mxu0 0.0
    %127 = vmatmul.mubr.f32.gmra.mrb[0].mxu0 %v51
    %v128 = vpop.f32.mrb[0].mxu0
    %v129 = vadd.f32 0.0, %v128
    %v130 = vpop.f32.mrb[0].mxu0
    %131 = vmatprep.mubr.f32.mxu0 0.0
    %132 = vmatmul.mubr.f32.gmra.mrb[0].mxu0 %v54
    %v133 = vpop.f32.mrb[0].mxu0
    %v134 = vadd.f32 0.0, %v133
    %v135 = vpop.f32.mrb[0].mxu0
    %136 = vmatprep.mubr.f32.mxu0 0.0
    %137 = vmatmul.mubr.f32.gmra.mrb[0].mxu0 %v57
    %v138 = vpop.f32.mrb[0].mxu0
    %v139 = vadd.f32 0.0, %v138
    %v140 = vpop.f32.mrb[0].mxu0
    %141 = vmatprep.mubr.f32.mxu0 0.0
    %142 = vmatmul.mubr.f32.gmra.mrb[0].mxu0 %v60
    %v143 = vpop.f32.mrb[0].mxu0
    %v144 = vadd.f32 0.0, %v143
    %v145 = vpop.f32.mrb[0].mxu0
    %146 = vdwg.mxu0
    %v147 = vld [vmem:[%s2] sm:$0xff]
    %v148 = vlaneseq
    %v149 = vshrl.u32 %v148, 7
    %v150 = vsub.s32 0, %v149
    %v151 = vrot.slane %v147, %v150
    %v152 = vlaneseq
    %v153 = vshrl.u32 %v152, 7
    %v154 = vsub.s32 1, %v153
    %v155 = vrot.slane %v147, %v154
    %v156 = vlaneseq
    %v157 = vshrl.u32 %v156, 7
    %v158 = vsub.s32 2, %v157
    %v159 = vrot.slane %v147, %v158
    %v160 = vlaneseq
    %v161 = vshrl.u32 %v160, 7
    %v162 = vsub.s32 3, %v161
    %v163 = vrot.slane %v147, %v162
    %v164 = vlaneseq
    %v165 = vshrl.u32 %v164, 7
    %v166 = vsub.s32 4, %v165
    %v167 = vrot.slane %v147, %v166
    %v168 = vlaneseq
    %v169 = vshrl.u32 %v168, 7
    %v170 = vsub.s32 5, %v169
    %v171 = vrot.slane %v147, %v170
    %v172 = vlaneseq
    %v173 = vshrl.u32 %v172, 7
    %v174 = vsub.s32 6, %v173
    %v175 = vrot.slane %v147, %v174
    %v176 = vlaneseq
    %v177 = vshrl.u32 %v176, 7
    %v178 = vsub.s32 7, %v177
    %v179 = vrot.slane %v147, %v178
    %vm180 = vcmp.ge.s32.totalorder %v23, 16
    %vm181 = vcmp.lt.s32.totalorder %v23, 24
    %vm182 = vmand %vm180, %vm181
    %v183 = vsel %vm182, 1.0, 0.5
    %v184 = vsel %vm182, 0.0, 0.5
    %v185 = vmul.f32 %v151, 0.0
    %v186 = vadd.f32 %v129, %v185
    %v187 = vmul.f32 %v155, 0.0
    %v188 = vadd.f32 %v186, %v187
    %v189 = vmul.f32 %v159, 0.0
    %v190 = vadd.f32 %v188, %v189
    %v191 = vmul.f32 %v163, 0.0
    %v192 = vadd.f32 %v190, %v191
    %v193 = vmul.f32 %v167, 0.0
    %v194 = vadd.f32 %v192, %v193
    %v195 = vmul.f32 %v171, 0.0
    %v196 = vadd.f32 %v194, %v195
    %v197 = vmul.f32 %v175, 0.0
    %v198 = vadd.f32 %v196, %v197
    %v199 = vmul.f32 %v179, 0.0
    %v200 = vadd.f32 %v198, %v199
    %v201 = vmul.f32 %v183, %v200
    %v202 = vtanh.pop %v201
    %v203 = vmul.f32 %v183, %v202
    %v204 = vadd.f32 %v184, %v203
    %v205 = vmul.f32 %v204, 0.0
    %207 = vrot.lane.b32.xlu0 %v204, 112
    %v208 = vpop.permute.xlu0 %207
    %v210 = vmul.f32 %v204, %v208
    %212 = vrot.lane.b32.xlu0 %v210, 8
    %v213 = vpop.permute.xlu0 %212
    %v215 = vadd.f32 %v205, %v213
    %v216 = vtanh.pop %v215
    %218 = vrot.lane.b32.xlu0 %v216, 16
    %v219 = vpop.permute.xlu0 %218
    %v221 = vmul.f32 %v204, %v219
    %223 = vset.pattern.permute.xlu0 24
    %224 = vperm.xlu0 %223, %v221
    %v225 = vpop.permute.xlu0 %224
    %v227 = vmul.f32 %v225, %v151
    %v229 = vrot.slane %v227, 4
    %v231 = vadd.f32 %v129, %v229
    %232 = vset.pattern.permute.xlu0 25
    %233 = vperm.xlu0 %232, %v221
    %v234 = vpop.permute.xlu0 %233
    %v236 = vmul.f32 %v234, %v155
    %v238 = vrot.slane %v236, 4
    %v240 = vadd.f32 %v231, %v238
    %241 = vset.pattern.permute.xlu0 26
    %242 = vperm.xlu0 %241, %v221
    %v243 = vpop.permute.xlu0 %242
    %v245 = vmul.f32 %v243, %v159
    %v247 = vrot.slane %v245, 4
    %v249 = vadd.f32 %v240, %v247
    %250 = vset.pattern.permute.xlu0 27
    %251 = vperm.xlu0 %250, %v221
    %v252 = vpop.permute.xlu0 %251
    %v254 = vmul.f32 %v252, %v163
    %v256 = vrot.slane %v254, 4
    %v258 = vadd.f32 %v249, %v256
    %259 = vset.pattern.permute.xlu0 28
    %260 = vperm.xlu0 %259, %v221
    %v261 = vpop.permute.xlu0 %260
    %v263 = vmul.f32 %v261, %v167
    %v265 = vrot.slane %v263, 4
    %v267 = vadd.f32 %v258, %v265
    %268 = vset.pattern.permute.xlu0 29
    %269 = vperm.xlu0 %268, %v221
    %v270 = vpop.permute.xlu0 %269
    %v272 = vmul.f32 %v270, %v171
    %v274 = vrot.slane %v272, 4
    %v276 = vadd.f32 %v267, %v274
    %277 = vset.pattern.permute.xlu0 30
    %278 = vperm.xlu0 %277, %v221
    %v279 = vpop.permute.xlu0 %278
    %v281 = vmul.f32 %v279, %v175
    %v283 = vrot.slane %v281, 4
    %v285 = vadd.f32 %v276, %v283
    %286 = vset.pattern.permute.xlu0 31
    %287 = vperm.xlu0 %286, %v221
    %v288 = vpop.permute.xlu0 %287
    %v290 = vmul.f32 %v288, %v179
    %v292 = vrot.slane %v290, 4
    %v294 = vadd.f32 %v285, %v292
    %v295 = vmul.f32 %v183, %v294
    %v296 = vtanh.pop %v295
    %v297 = vmul.f32 %v183, %v296
    %v298 = vadd.f32 %v184, %v297
    %v300 = vrot.slane %v215, 4
    %v302 = vmul.f32 %v298, %v300
    %304 = vrot.lane.b32.xlu0 %v298, 112
    %v305 = vpop.permute.xlu0 %304
    %v307 = vmul.f32 %v298, %v305
    %309 = vrot.lane.b32.xlu0 %v307, 8
    %v310 = vpop.permute.xlu0 %309
    %v312 = vadd.f32 %v302, %v310
    %v313 = vtanh.pop %v312
    %315 = vrot.lane.b32.xlu0 %v313, 16
    %v316 = vpop.permute.xlu0 %315
    %v318 = vmul.f32 %v298, %v316
    %320 = vset.pattern.permute.xlu0 24
    %321 = vperm.xlu0 %320, %v318
    %v322 = vpop.permute.xlu0 %321
    %v324 = vmul.f32 %v322, %v151
    %v326 = vrot.slane %v324, 4
    %v328 = vadd.f32 %v134, %v326
    %329 = vset.pattern.permute.xlu0 25
    %330 = vperm.xlu0 %329, %v318
    %v331 = vpop.permute.xlu0 %330
    %v333 = vmul.f32 %v331, %v155
    %v335 = vrot.slane %v333, 4
    %v337 = vadd.f32 %v328, %v335
    %338 = vset.pattern.permute.xlu0 26
    %339 = vperm.xlu0 %338, %v318
    %v340 = vpop.permute.xlu0 %339
    %v342 = vmul.f32 %v340, %v159
    %v344 = vrot.slane %v342, 4
    %v346 = vadd.f32 %v337, %v344
    %347 = vset.pattern.permute.xlu0 27
    %348 = vperm.xlu0 %347, %v318
    %v349 = vpop.permute.xlu0 %348
    %v351 = vmul.f32 %v349, %v163
    %v353 = vrot.slane %v351, 4
    %v355 = vadd.f32 %v346, %v353
    %356 = vset.pattern.permute.xlu0 28
    %357 = vperm.xlu0 %356, %v318
    %v358 = vpop.permute.xlu0 %357
    %v360 = vmul.f32 %v358, %v167
    %v362 = vrot.slane %v360, 4
    %v364 = vadd.f32 %v355, %v362
    %365 = vset.pattern.permute.xlu0 29
    %366 = vperm.xlu0 %365, %v318
    %v367 = vpop.permute.xlu0 %366
    %v369 = vmul.f32 %v367, %v171
    %v371 = vrot.slane %v369, 4
    %v373 = vadd.f32 %v364, %v371
    %374 = vset.pattern.permute.xlu0 30
    %375 = vperm.xlu0 %374, %v318
    %v376 = vpop.permute.xlu0 %375
    %v378 = vmul.f32 %v376, %v175
    %v380 = vrot.slane %v378, 4
    %v382 = vadd.f32 %v373, %v380
    %383 = vset.pattern.permute.xlu0 31
    %384 = vperm.xlu0 %383, %v318
    %v385 = vpop.permute.xlu0 %384
    %v387 = vmul.f32 %v385, %v179
    %v389 = vrot.slane %v387, 4
    %v391 = vadd.f32 %v382, %v389
    %v392 = vmul.f32 %v183, %v391
    %v393 = vtanh.pop %v392
    %v394 = vmul.f32 %v183, %v393
    %v395 = vadd.f32 %v184, %v394
    %v397 = vrot.slane %v312, 4
    %v399 = vmul.f32 %v395, %v397
    %401 = vrot.lane.b32.xlu0 %v395, 112
    %v402 = vpop.permute.xlu0 %401
    %v404 = vmul.f32 %v395, %v402
    %406 = vrot.lane.b32.xlu0 %v404, 8
    %v407 = vpop.permute.xlu0 %406
    %v409 = vadd.f32 %v399, %v407
    %v410 = vtanh.pop %v409
    %412 = vrot.lane.b32.xlu0 %v410, 16
    %v413 = vpop.permute.xlu0 %412
    %v415 = vmul.f32 %v395, %v413
    %417 = vset.pattern.permute.xlu0 24
    %418 = vperm.xlu0 %417, %v415
    %v419 = vpop.permute.xlu0 %418
    %v421 = vmul.f32 %v419, %v151
    %v423 = vrot.slane %v421, 4
    %v425 = vadd.f32 %v134, %v423
    %426 = vset.pattern.permute.xlu0 25
    %427 = vperm.xlu0 %426, %v415
    %v428 = vpop.permute.xlu0 %427
    %v430 = vmul.f32 %v428, %v155
    %v432 = vrot.slane %v430, 4
    %v434 = vadd.f32 %v425, %v432
    %435 = vset.pattern.permute.xlu0 26
    %436 = vperm.xlu0 %435, %v415
    %v437 = vpop.permute.xlu0 %436
    %v439 = vmul.f32 %v437, %v159
    %v441 = vrot.slane %v439, 4
    %v443 = vadd.f32 %v434, %v441
    %444 = vset.pattern.permute.xlu0 27
    %445 = vperm.xlu0 %444, %v415
    %v446 = vpop.permute.xlu0 %445
    %v448 = vmul.f32 %v446, %v163
    %v450 = vrot.slane %v448, 4
    %v452 = vadd.f32 %v443, %v450
    %453 = vset.pattern.permute.xlu0 28
    %454 = vperm.xlu0 %453, %v415
    %v455 = vpop.permute.xlu0 %454
    %v457 = vmul.f32 %v455, %v167
    %v459 = vrot.slane %v457, 4
    %v461 = vadd.f32 %v452, %v459
    %462 = vset.pattern.permute.xlu0 29
    %463 = vperm.xlu0 %462, %v415
    %v464 = vpop.permute.xlu0 %463
    %v466 = vmul.f32 %v464, %v171
    %v468 = vrot.slane %v466, 4
    %v470 = vadd.f32 %v461, %v468
    %471 = vset.pattern.permute.xlu0 30
    %472 = vperm.xlu0 %471, %v415
    %v473 = vpop.permute.xlu0 %472
    %v475 = vmul.f32 %v473, %v175
    %v477 = vrot.slane %v475, 4
    %v479 = vadd.f32 %v470, %v477
    %480 = vset.pattern.permute.xlu0 31
    %481 = vperm.xlu0 %480, %v415
    %v482 = vpop.permute.xlu0 %481
    %v484 = vmul.f32 %v482, %v179
    %v486 = vrot.slane %v484, 4
    %v488 = vadd.f32 %v479, %v486
    %v489 = vmul.f32 %v183, %v488
    %v490 = vtanh.pop %v489
    %v491 = vmul.f32 %v183, %v490
    %v492 = vadd.f32 %v184, %v491
    %v494 = vrot.slane %v409, 4
    %v496 = vmul.f32 %v492, %v494
    %498 = vrot.lane.b32.xlu0 %v492, 112
    %v499 = vpop.permute.xlu0 %498
    %v501 = vmul.f32 %v492, %v499
    %503 = vrot.lane.b32.xlu0 %v501, 8
    %v504 = vpop.permute.xlu0 %503
    %v506 = vadd.f32 %v496, %v504
    %v507 = vtanh.pop %v506
    %509 = vrot.lane.b32.xlu0 %v507, 16
    %v510 = vpop.permute.xlu0 %509
    %v512 = vmul.f32 %v492, %v510
    %514 = vset.pattern.permute.xlu0 24
    %515 = vperm.xlu0 %514, %v512
    %v516 = vpop.permute.xlu0 %515
    %v518 = vmul.f32 %v516, %v151
    %v520 = vrot.slane %v518, 4
    %v522 = vadd.f32 %v139, %v520
    %523 = vset.pattern.permute.xlu0 25
    %524 = vperm.xlu0 %523, %v512
    %v525 = vpop.permute.xlu0 %524
    %v527 = vmul.f32 %v525, %v155
    %v529 = vrot.slane %v527, 4
    %v531 = vadd.f32 %v522, %v529
    %532 = vset.pattern.permute.xlu0 26
    %533 = vperm.xlu0 %532, %v512
    %v534 = vpop.permute.xlu0 %533
    %v536 = vmul.f32 %v534, %v159
    %v538 = vrot.slane %v536, 4
    %v540 = vadd.f32 %v531, %v538
    %541 = vset.pattern.permute.xlu0 27
    %542 = vperm.xlu0 %541, %v512
    %v543 = vpop.permute.xlu0 %542
    %v545 = vmul.f32 %v543, %v163
    %v547 = vrot.slane %v545, 4
    %v549 = vadd.f32 %v540, %v547
    %550 = vset.pattern.permute.xlu0 28
    %551 = vperm.xlu0 %550, %v512
    %v552 = vpop.permute.xlu0 %551
    %v554 = vmul.f32 %v552, %v167
    %v556 = vrot.slane %v554, 4
    %v558 = vadd.f32 %v549, %v556
    %559 = vset.pattern.permute.xlu0 29
    %560 = vperm.xlu0 %559, %v512
    %v561 = vpop.permute.xlu0 %560
    %v563 = vmul.f32 %v561, %v171
    %v565 = vrot.slane %v563, 4
    %v567 = vadd.f32 %v558, %v565
    %568 = vset.pattern.permute.xlu0 30
    %569 = vperm.xlu0 %568, %v512
    %v570 = vpop.permute.xlu0 %569
    %v572 = vmul.f32 %v570, %v175
    %v574 = vrot.slane %v572, 4
    %v576 = vadd.f32 %v567, %v574
    %577 = vset.pattern.permute.xlu0 31
    %578 = vperm.xlu0 %577, %v512
    %v579 = vpop.permute.xlu0 %578
    %v581 = vmul.f32 %v579, %v179
    %v583 = vrot.slane %v581, 4
    %v585 = vadd.f32 %v576, %v583
    %v586 = vmul.f32 %v183, %v585
    %v587 = vtanh.pop %v586
    %v588 = vmul.f32 %v183, %v587
    %v589 = vadd.f32 %v184, %v588
    %v591 = vrot.slane %v506, 4
    %v593 = vmul.f32 %v589, %v591
    %595 = vrot.lane.b32.xlu0 %v589, 112
    %v596 = vpop.permute.xlu0 %595
    %v598 = vmul.f32 %v589, %v596
    %600 = vrot.lane.b32.xlu0 %v598, 8
    %v601 = vpop.permute.xlu0 %600
    %v603 = vadd.f32 %v593, %v601
    %v604 = vtanh.pop %v603
    %606 = vrot.lane.b32.xlu0 %v604, 16
    %v607 = vpop.permute.xlu0 %606
    %v609 = vmul.f32 %v589, %v607
    %611 = vset.pattern.permute.xlu0 24
    %612 = vperm.xlu0 %611, %v609
    %v613 = vpop.permute.xlu0 %612
    %v615 = vmul.f32 %v613, %v151
    %v617 = vrot.slane %v615, 4
    %v619 = vadd.f32 %v139, %v617
    %620 = vset.pattern.permute.xlu0 25
    %621 = vperm.xlu0 %620, %v609
    %v622 = vpop.permute.xlu0 %621
    %v624 = vmul.f32 %v622, %v155
    %v626 = vrot.slane %v624, 4
    %v628 = vadd.f32 %v619, %v626
    %629 = vset.pattern.permute.xlu0 26
    %630 = vperm.xlu0 %629, %v609
    %v631 = vpop.permute.xlu0 %630
    %v633 = vmul.f32 %v631, %v159
    %v635 = vrot.slane %v633, 4
    %v637 = vadd.f32 %v628, %v635
    %638 = vset.pattern.permute.xlu0 27
    %639 = vperm.xlu0 %638, %v609
    %v640 = vpop.permute.xlu0 %639
    %v642 = vmul.f32 %v640, %v163
    %v644 = vrot.slane %v642, 4
    %v646 = vadd.f32 %v637, %v644
    %647 = vset.pattern.permute.xlu0 28
    %648 = vperm.xlu0 %647, %v609
    %v649 = vpop.permute.xlu0 %648
    %v651 = vmul.f32 %v649, %v167
    %v653 = vrot.slane %v651, 4
    %v655 = vadd.f32 %v646, %v653
    %656 = vset.pattern.permute.xlu0 29
    %657 = vperm.xlu0 %656, %v609
    %v658 = vpop.permute.xlu0 %657
    %v660 = vmul.f32 %v658, %v171
    %v662 = vrot.slane %v660, 4
    %v664 = vadd.f32 %v655, %v662
    %665 = vset.pattern.permute.xlu0 30
    %666 = vperm.xlu0 %665, %v609
    %v667 = vpop.permute.xlu0 %666
    %v669 = vmul.f32 %v667, %v175
    %v671 = vrot.slane %v669, 4
    %v673 = vadd.f32 %v664, %v671
    %674 = vset.pattern.permute.xlu0 31
    %675 = vperm.xlu0 %674, %v609
    %v676 = vpop.permute.xlu0 %675
    %v678 = vmul.f32 %v676, %v179
    %v680 = vrot.slane %v678, 4
    %v682 = vadd.f32 %v673, %v680
    %v683 = vmul.f32 %v183, %v682
    %v684 = vtanh.pop %v683
    %v685 = vmul.f32 %v183, %v684
    %v686 = vadd.f32 %v184, %v685
    %v688 = vrot.slane %v603, 4
    %v690 = vmul.f32 %v686, %v688
    %692 = vrot.lane.b32.xlu0 %v686, 112
    %v693 = vpop.permute.xlu0 %692
    %v695 = vmul.f32 %v686, %v693
    %697 = vrot.lane.b32.xlu0 %v695, 8
    %v698 = vpop.permute.xlu0 %697
    %v700 = vadd.f32 %v690, %v698
    %v701 = vtanh.pop %v700
    %703 = vrot.lane.b32.xlu0 %v701, 16
    %v704 = vpop.permute.xlu0 %703
    %v706 = vmul.f32 %v686, %v704
    %708 = vset.pattern.permute.xlu0 24
    %709 = vperm.xlu0 %708, %v706
    %v710 = vpop.permute.xlu0 %709
    %v712 = vmul.f32 %v710, %v151
    %v714 = vrot.slane %v712, 4
    %v716 = vadd.f32 %v144, %v714
    %717 = vset.pattern.permute.xlu0 25
    %718 = vperm.xlu0 %717, %v706
    %v719 = vpop.permute.xlu0 %718
    %v721 = vmul.f32 %v719, %v155
    %v723 = vrot.slane %v721, 4
    %v725 = vadd.f32 %v716, %v723
    %726 = vset.pattern.permute.xlu0 26
    %727 = vperm.xlu0 %726, %v706
    %v728 = vpop.permute.xlu0 %727
    %v730 = vmul.f32 %v728, %v159
    %v732 = vrot.slane %v730, 4
    %v734 = vadd.f32 %v725, %v732
    %735 = vset.pattern.permute.xlu0 27
    %736 = vperm.xlu0 %735, %v706
    %v737 = vpop.permute.xlu0 %736
    %v739 = vmul.f32 %v737, %v163
    %v741 = vrot.slane %v739, 4
    %v743 = vadd.f32 %v734, %v741
    %744 = vset.pattern.permute.xlu0 28
    %745 = vperm.xlu0 %744, %v706
    %v746 = vpop.permute.xlu0 %745
    %v748 = vmul.f32 %v746, %v167
    %v750 = vrot.slane %v748, 4
    %v752 = vadd.f32 %v743, %v750
    %753 = vset.pattern.permute.xlu0 29
    %754 = vperm.xlu0 %753, %v706
    %v755 = vpop.permute.xlu0 %754
    %v757 = vmul.f32 %v755, %v171
    %v759 = vrot.slane %v757, 4
    %v761 = vadd.f32 %v752, %v759
    %762 = vset.pattern.permute.xlu0 30
    %763 = vperm.xlu0 %762, %v706
    %v764 = vpop.permute.xlu0 %763
    %v766 = vmul.f32 %v764, %v175
    %v768 = vrot.slane %v766, 4
    %v770 = vadd.f32 %v761, %v768
    %771 = vset.pattern.permute.xlu0 31
    %772 = vperm.xlu0 %771, %v706
    %v773 = vpop.permute.xlu0 %772
    %v775 = vmul.f32 %v773, %v179
    %v777 = vrot.slane %v775, 4
    %v779 = vadd.f32 %v770, %v777
    %v780 = vmul.f32 %v183, %v779
    %v781 = vtanh.pop %v780
    %v782 = vmul.f32 %v183, %v781
    %v783 = vadd.f32 %v184, %v782
    %v785 = vrot.slane %v700, 4
    %v787 = vmul.f32 %v783, %v785
    %789 = vrot.lane.b32.xlu0 %v783, 112
    %v790 = vpop.permute.xlu0 %789
    %v792 = vmul.f32 %v783, %v790
    %794 = vrot.lane.b32.xlu0 %v792, 8
    %v795 = vpop.permute.xlu0 %794
    %v797 = vadd.f32 %v787, %v795
    %v798 = vtanh.pop %v797
    %800 = vrot.lane.b32.xlu0 %v798, 16
    %v801 = vpop.permute.xlu0 %800
    %v803 = vmul.f32 %v783, %v801
    %805 = vset.pattern.permute.xlu0 24
    %806 = vperm.xlu0 %805, %v803
    %v807 = vpop.permute.xlu0 %806
    %v809 = vmul.f32 %v807, %v151
    %v811 = vrot.slane %v809, 4
    %v813 = vadd.f32 %v144, %v811
    %814 = vset.pattern.permute.xlu0 25
    %815 = vperm.xlu0 %814, %v803
    %v816 = vpop.permute.xlu0 %815
    %v818 = vmul.f32 %v816, %v155
    %v820 = vrot.slane %v818, 4
    %v822 = vadd.f32 %v813, %v820
    %823 = vset.pattern.permute.xlu0 26
    %824 = vperm.xlu0 %823, %v803
    %v825 = vpop.permute.xlu0 %824
    %v827 = vmul.f32 %v825, %v159
    %v829 = vrot.slane %v827, 4
    %v831 = vadd.f32 %v822, %v829
    %832 = vset.pattern.permute.xlu0 27
    %833 = vperm.xlu0 %832, %v803
    %v834 = vpop.permute.xlu0 %833
    %v836 = vmul.f32 %v834, %v163
    %v838 = vrot.slane %v836, 4
    %v840 = vadd.f32 %v831, %v838
    %841 = vset.pattern.permute.xlu0 28
    %842 = vperm.xlu0 %841, %v803
    %v843 = vpop.permute.xlu0 %842
    %v845 = vmul.f32 %v843, %v167
    %v847 = vrot.slane %v845, 4
    %v849 = vadd.f32 %v840, %v847
    %850 = vset.pattern.permute.xlu0 29
    %851 = vperm.xlu0 %850, %v803
    %v852 = vpop.permute.xlu0 %851
    %v854 = vmul.f32 %v852, %v171
    %v856 = vrot.slane %v854, 4
    %v858 = vadd.f32 %v849, %v856
    %859 = vset.pattern.permute.xlu0 30
    %860 = vperm.xlu0 %859, %v803
    %v861 = vpop.permute.xlu0 %860
    %v863 = vmul.f32 %v861, %v175
    %v865 = vrot.slane %v863, 4
    %v867 = vadd.f32 %v858, %v865
    %868 = vset.pattern.permute.xlu0 31
    %869 = vperm.xlu0 %868, %v803
    %v870 = vpop.permute.xlu0 %869
    %v872 = vmul.f32 %v870, %v179
    %v874 = vrot.slane %v872, 4
    %v876 = vadd.f32 %v867, %v874
    %v877 = vmul.f32 %v183, %v876
    %v878 = vtanh.pop %v877
    %v879 = vmul.f32 %v183, %v878
    %v880 = vadd.f32 %v184, %v879
    %v882 = vrot.slane %v797, 4
    %v884 = vmul.f32 %v880, %v882
    %886 = vrot.lane.b32.xlu0 %v880, 112
    %v887 = vpop.permute.xlu0 %886
    %v889 = vmul.f32 %v880, %v887
    %891 = vrot.lane.b32.xlu0 %v889, 8
    %v892 = vpop.permute.xlu0 %891
    %v894 = vadd.f32 %v884, %v892
    %v895 = vtanh.pop %v894
    %897 = vrot.lane.b32.xlu0 %v895, 16
    %v898 = vpop.permute.xlu0 %897
    %v900 = vmul.f32 %v880, %v898
    %902 = vrot.lane.b32.xlu0 %v900, 104
    %v903 = vpop.permute.xlu0 %902
    %vm905 = vcmask 64516
    %906 = vst.msk [vmem:[#allocation2 - $0x4] sm:$0xf0] %vm905, %v903
    %908 = vrot.lane.b32.xlu0 %v894, 120
    %v909 = vpop.permute.xlu0 %908
    %911 = vst.msk [vmem:[#allocation4 - $0x4] sm:$0xf0] %vm905, %v909
    // Predicated region
    $region14: #{tpu_custom_call.1} parent=1 // pred_check
      _
    $region15: #{tpu_custom_call.1} parent=1 // pred_check_branch
      %913 = sbr.rel (0) target = $region17
    $region16: #{tpu_custom_call.1} parent=1 // pred_region
      %s915 = ssub.s32 64, 64
      %916 = vsyncadd [#allocation3], %s915
      %s918 = sshll.u32 [#allocation2], 4
      %s919 = int_to_ptr.vmem [resolvable:$true] %s918
      %921 = dma.vmem_to_hbm [thread:$0]  %s919, 64, %s3, [#allocation3]
    $region17: #{tpu_custom_call.1} parent=1 // pred_fallthru
      _
    // Predicated region
    $region18: #{tpu_custom_call.1} parent=1 // pred_check
      _
    $region19: #{tpu_custom_call.1} parent=1 // pred_check_branch
      %923 = sbr.rel (0) target = $region21
    $region20: #{tpu_custom_call.1} parent=1 // pred_region
      %s925 = ssub.s32 64, 64
      %926 = vsyncadd [#allocation5], %s925
      %s928 = sshll.u32 [#allocation4], 4
      %s929 = int_to_ptr.vmem [resolvable:$true] %s928
      %931 = dma.vmem_to_hbm [thread:$0]  %s929, 64, %s4, [#allocation5]
    $region21: #{tpu_custom_call.1} parent=1 // pred_fallthru
      _
    // Predicated region
    $region22: #{tpu_custom_call.1} parent=1 // pred_check
      _
    $region23: #{tpu_custom_call.1} parent=1 // pred_check_branch
      %933 = sbr.rel (0) target = $region25
    $region24: #{tpu_custom_call.1} parent=1 // pred_region
      %934 = dma.done [#allocation3], 64
    $region25: #{tpu_custom_call.1} parent=1 // pred_fallthru
      _
    // Predicated region
    $region26: #{tpu_custom_call.1} parent=1 // pred_check
      _
    $region27: #{tpu_custom_call.1} parent=1 // pred_check_branch
      %936 = sbr.rel (0) target = $region29
    $region28: #{tpu_custom_call.1} parent=1 // pred_region
      %937 = dma.done [#allocation5], 64
    $region29: #{tpu_custom_call.1} parent=1 // pred_fallthru
      _
    %938 = vsyncpa [#allocation3], 1
    %939 = vsyncpa [#allocation5], 1

</llo_original>
